<compile_context>
chip_gen: v7x
topology: tpu7x:2x2x1
jax: 0.10.0
libtpu: 0.0.40
codegen_flags: <defaults>
</compile_context>

<pallas_src>
import functools

import jax
import jax.numpy as jnp
from jax.experimental import pallas as pl
from jax.experimental.pallas import tpu as pltpu


def _causal_conv1d_kernel(xp_ref, xm_ref, w_ref, b_ref, o_ref, col_ref, win_ref, *,
                          kernel_size, dilation, c_in, t_tile, hb, use_prev):
    """One (batch, time-tile) grid step.

    xp_ref : (1, C_in, hb)        columns just before this tile (fast path)
    xm_ref : (1, C_in, t_main)    this tile's input columns
                                  (t_main = t_tile, or t_tile + halo on compat path)
    w_ref  : (C_out, K*C_in)      im2col weight (contraction on lanes)
    b_ref  : (C_out, 1)           f32 bias
    o_ref  : (1, C_out, t_tile)
    col_ref: (K*C_in, t_tile)     im2col staging scratch (compute dtype)
    win_ref: (C_in, hb + t_tile)  [halo | main] window scratch (fast path)
    """
    halo = (kernel_size - 1) * dilation
    cdtype = col_ref.dtype

    if use_prev:
        j = pl.program_id(1)
        if halo > 0:
            # Last `halo` columns preceding this tile; for the first tile the
            # causal left padding is zeros.
            tail = xp_ref[0, :, hb - halo:hb].astype(cdtype)
            keep = (j > 0).astype(cdtype)
            win_ref[:, hb - halo:hb] = tail * keep
        # Main columns stored at a 128-aligned lane offset (unmasked stores).
        win_ref[:, hb:hb + t_tile] = xm_ref[0].astype(cdtype)

    # im2col: stack the K dilated taps along the contraction (sublane) axis so
    # the MXU sees one deep (K*C_in) contraction instead of K shallow ones.
    for k in range(kernel_size):
        rows = slice(k * c_in, (k + 1) * c_in)
        if use_prev:
            off = hb - halo + k * dilation
            col_ref[rows, :] = win_ref[:, off:off + t_tile]
        else:
            off = k * dilation
            col_ref[rows, :] = xm_ref[0, :, off:off + t_tile].astype(cdtype)

    # Single deep MXU contraction, f32 accumulation; bias added once in f32.
    acc = jnp.dot(w_ref[...], col_ref[...], preferred_element_type=jnp.float32)
    o_ref[0] = (acc + b_ref[...]).astype(o_ref.dtype)


def causal_conv1d(x, weight, bias=None, *, stride=1, dilation=1,
                  time_tile=1024, compute_dtype=None):
    """Causal 1D convolution (groups=1), matching CausalConv1d.forward.

    x: (B, C_in, T), weight: (C_out, C_in, K) [torch layout], bias: (C_out,).
    Pass compute_dtype=jnp.bfloat16 for the bf16 MXU path (f32 accumulation).
    """
    B, c_in, T = x.shape
    c_out, c_in_w, K = weight.shape
    assert c_in_w == c_in, "grouped convolutions are not supported (groups must be 1)"
    assert K >= 1 and stride >= 1 and dilation >= 1

    if stride > 1:
        # TODO(synk): in-kernel strided taps (phase decomposition of the time
        # axis); for now compute the stride-1 causal conv and subsample, which
        # matches Conv1d's strided-output semantics exactly.
        full = causal_conv1d(x, weight, bias, stride=1, dilation=dilation,
                             time_tile=time_tile, compute_dtype=compute_dtype)
        return full[:, :, ::stride]

    halo = (K - 1) * dilation
    t_out = T                                   # stride-1 causal conv keeps the length
    out_dtype = x.dtype
    cdtype = jnp.dtype(compute_dtype) if compute_dtype is not None else jnp.dtype(x.dtype)
    csize = jnp.dtype(cdtype).itemsize
    osize = jnp.dtype(out_dtype).itemsize

    # im2col weight layout: row (k*C_in + c) <-> weight[:, c, k]; contraction on lanes.
    w2 = jnp.transpose(weight, (0, 2, 1)).reshape(c_out, K * c_in).astype(cdtype)
    if bias is None:
        bias = jnp.zeros((c_out,), jnp.float32)
    b2 = bias.reshape(c_out, 1).astype(jnp.float32)
    xk = x.astype(cdtype)

    use_prev = halo <= t_out
    if use_prev:
        # ---- fast path: tiled time axis, halo fetched as a small aligned block ----
        hb = 128 * pl.cdiv(max(halo, 1), 128)             # halo block, lane aligned
        t_tile = hb * pl.cdiv(max(time_tile, 128), hb)    # multiple of hb (and of 128)

        def est(tt):
            return ((c_in * tt + c_in * hb) * csize * 2          # double-buffered x blocks
                    + c_out * tt * osize * 2                     # double-buffered output
                    + (K * c_in * tt + c_in * (hb + tt)) * csize  # scratch
                    + c_out * K * c_in * csize + c_out * 4)       # weight + bias

        # Keep the per-step working set modest (v7x has only 64 MiB physical VMEM).
        while t_tile > hb and est(t_tile) > 20 * (1 << 20):
            t_tile = max(hb, (t_tile // 2) // hb * hb)
        if t_tile >= t_out:                               # whole sequence in one tile
            t_tile = hb = t_out
        n_t = pl.cdiv(t_out, t_tile)
        r = t_tile // hb
        t_main = t_tile
        x_prev, x_main = xk, xk
        prev_spec = pl.BlockSpec((1, c_in, hb),
                                 lambda b, j: (b, 0, jnp.maximum(j * r - 1, 0)))
        win_shape = (c_in, hb + t_tile)
        vmem_est = est(t_tile)
    else:
        # ---- compat path (halo >= T, e.g. huge dilation on a short sequence) ----
        # Materialize the causal left pad once and run a single time tile.
        x_main = jnp.pad(xk, ((0, 0), (0, 0), (halo, 0)))
        x_prev = x_main                                    # unused by the kernel
        hb = 0
        t_tile, n_t = t_out, 1
        t_main = t_out + halo
        prev_spec = pl.BlockSpec((1, c_in, t_main), lambda b, j: (b, 0, 0))
        win_shape = (8, 128)                               # unused dummy scratch
        vmem_est = (2 * c_in * t_main * csize * 2 + c_out * t_out * osize * 2
                    + K * c_in * t_tile * csize + c_out * K * c_in * csize)

    kernel = functools.partial(
        _causal_conv1d_kernel, kernel_size=K, dilation=dilation,
        c_in=c_in, t_tile=t_tile, hb=hb, use_prev=use_prev)

    grid_spec = pltpu.PrefetchScalarGridSpec(
        num_scalar_prefetch=0,
        grid=(B, n_t),
        in_specs=[
            prev_spec,
            pl.BlockSpec((1, c_in, t_main), lambda b, j: (b, 0, j)),
            pl.BlockSpec((c_out, K * c_in), lambda b, j: (0, 0)),
            pl.BlockSpec((c_out, 1), lambda b, j: (0, 0)),
        ],
        out_specs=pl.BlockSpec((1, c_out, t_tile), lambda b, j: (b, 0, j)),
        scratch_shapes=[
            pltpu.VMEM((K * c_in, t_tile), cdtype),   # im2col staging
            pltpu.VMEM(win_shape, cdtype),            # [halo | main] window
        ],
    )

    vmem_limit = int(min(max(4 * vmem_est, 32 << 20), 64 << 20))
    return pl.pallas_call(
        kernel,
        out_shape=jax.ShapeDtypeStruct((B, c_out, t_out), out_dtype),
        grid_spec=grid_spec,
        compiler_params=pltpu.CompilerParams(
            dimension_semantics=("parallel", "parallel"),
            vmem_limit_bytes=vmem_limit),
    )(x_prev, x_main, w2, b2)


def _reference(x, weight, bias, *, stride=1, dilation=1):
    """Pure-JAX reference (lax conv) for correctness checking."""
    K = weight.shape[-1]
    pad = (K - 1) * dilation
    out = jax.lax.conv_general_dilated(
        x, weight,
        window_strides=(stride,),
        padding=[(pad, 0)],
        rhs_dilation=(dilation,),
        dimension_numbers=("NCH", "OIH", "NCH"))
    return out + bias[None, :, None]


def _run_case(name, key, *, B, c_in, c_out, T, K, stride=1, dilation=1,
              compute_dtype=None, time_tile=1024, atol=1e-5, rtol=1e-5):
    kx, kw, kb = jax.random.split(key, 3)
    x = jax.random.normal(kx, (B, c_in, T), jnp.float32)
    bound = 1.0 / float(c_in * K) ** 0.5
    w = jax.random.uniform(kw, (c_out, c_in, K), jnp.float32, -bound, bound)
    b = jax.random.uniform(kb, (c_out,), jnp.float32, -bound, bound)

    out = causal_conv1d(x, w, b, stride=stride, dilation=dilation,
                        time_tile=time_tile, compute_dtype=compute_dtype)
    out = jax.block_until_ready(out)
    ref = _reference(x, w, b, stride=stride, dilation=dilation)
    assert out.shape == ref.shape, (name, out.shape, ref.shape)
    err = float(jnp.max(jnp.abs(out.astype(jnp.float32) - ref)))
    assert jnp.allclose(out.astype(jnp.float32), ref, atol=atol, rtol=rtol), \
        f"{name}: max abs err {err}"


if __name__ == "__main__":
    key = jax.random.PRNGKey(0)
    keys = jax.random.split(key, 6)

    # 1. Small shapes from the module's (B, C, T) convention: single time tile.
    _run_case("small", keys[0], B=2, c_in=4, c_out=8, T=16, K=3, dilation=2)
    # 2. Tiled time axis (2 tiles of 512) exercising the in-kernel causal halo.
    _run_case("tiled", keys[1], B=2, c_in=8, c_out=16, T=1024, K=3, dilation=2,
              time_tile=512)
    # 3. Uneven T (partial last tile, masked writeback) + larger dilation / K.
    _run_case("uneven", keys[2], B=2, c_in=8, c_out=16, T=920, K=5, dilation=3,
              time_tile=512)
    # 4. Strided conv (wrapper subsampling fallback), exercises the stride path.
    _run_case("strided", keys[3], B=2, c_in=4, c_out=8, T=64, K=3, stride=2)
    # 5. bf16 MXU inputs with f32 accumulation (deliberately looser tolerance).
    _run_case("bf16", keys[4], B=2, c_in=8, c_out=16, T=1024, K=3, dilation=2,
              time_tile=512, compute_dtype=jnp.bfloat16, atol=1e-1, rtol=5e-2)
    # 6. Degenerate halo >= T (compat path with materialized left pad).
    _run_case("long_halo", keys[5], B=1, c_in=4, c_out=4, T=8, K=3, dilation=8)

    print("KERNEL_OK")
</pallas_src>

<mosaic_0001>
module attributes {stable_mosaic.version = 11 : i64} {
  func.func @_causal_conv1d_kernel(%arg0: i32, %arg1: i32, %arg2: memref<1x4x16xf32, #tpu.memory_space<vmem>>, %arg3: memref<1x4x16xf32, #tpu.memory_space<vmem>>, %arg4: memref<8x12xf32, #tpu.memory_space<vmem>>, %arg5: memref<8x1xf32, #tpu.memory_space<vmem>>, %arg6: memref<1x8x16xf32, #tpu.memory_space<vmem>>, %arg7: memref<12x16xf32, #tpu.memory_space<vmem>>, %arg8: memref<4x32xf32, #tpu.memory_space<vmem>>) attributes {dimension_semantics = [#tpu.dimension_semantics<parallel>, #tpu.dimension_semantics<parallel>], iteration_bounds = array<i64: 2, 1>, scalar_prefetch = 0 : i64, scratch_operands = 2 : i64, tpu.core_type = #tpu.core_type<tc>, window_params = [{transform_indices = @transform_0, window_bounds = array<i64: 1, 4, 16>}, {transform_indices = @transform_1, window_bounds = array<i64: 1, 4, 16>}, {pipeline_mode = #tpu.pipeline_mode<synchronous>, transform_indices = @transform_2, window_bounds = array<i64: 8, 12>}, {pipeline_mode = #tpu.pipeline_mode<synchronous>, transform_indices = @transform_3, window_bounds = array<i64: 8, 1>}, {transform_indices = @transform_4, window_bounds = array<i64: 1, 8, 16>}]} {
    %c0 = arith.constant 0 : index
    %c0_0 = arith.constant 0 : index
    %c12 = arith.constant 12 : index
    %0 = vector.load %arg2[%c0, %c0_0, %c12] : memref<1x4x16xf32, #tpu.memory_space<vmem>>, vector<1x4x4xf32>
    %1 = vector.shape_cast %0 : vector<1x4x4xf32> to vector<4x4xf32>
    %c0_i32 = arith.constant 0 : i32
    %2 = arith.cmpi sgt, %arg1, %c0_i32 : i32
    %3 = arith.extui %2 : i1 to i32
    %4 = arith.sitofp %3 : i32 to f32
    %5 = vector.broadcast %4 : f32 to vector<4x4xf32>
    %6 = arith.mulf %1, %5 : vector<4x4xf32>
    %c0_1 = arith.constant 0 : index
    %c12_2 = arith.constant 12 : index
    %7 = vector.load %arg8[%c0_1, %c12_2] : memref<4x32xf32, #tpu.memory_space<vmem>>, vector<4x4xf32>
    tpu.vector_store %arg8[%c0_1, %c12_2], %6 {strides = array<i32>} : memref<4x32xf32, #tpu.memory_space<vmem>>, vector<4x4xf32>,
    %c0_3 = arith.constant 0 : index
    %c0_4 = arith.constant 0 : index
    %c0_5 = arith.constant 0 : index
    %8 = vector.load %arg3[%c0_3, %c0_4, %c0_5] : memref<1x4x16xf32, #tpu.memory_space<vmem>>, vector<1x4x16xf32>
    %9 = vector.shape_cast %8 : vector<1x4x16xf32> to vector<4x16xf32>
    %c0_6 = arith.constant 0 : index
    %c16 = arith.constant 16 : index
    %10 = vector.load %arg8[%c0_6, %c16] : memref<4x32xf32, #tpu.memory_space<vmem>>, vector<4x16xf32>
    tpu.vector_store %arg8[%c0_6, %c16], %9 {strides = array<i32>} : memref<4x32xf32, #tpu.memory_space<vmem>>, vector<4x16xf32>,
    %c0_7 = arith.constant 0 : index
    %c12_8 = arith.constant 12 : index
    %11 = vector.load %arg8[%c0_7, %c12_8] : memref<4x32xf32, #tpu.memory_space<vmem>>, vector<4x16xf32>
    %c0_9 = arith.constant 0 : index
    %c0_10 = arith.constant 0 : index
    %12 = vector.load %arg7[%c0_9, %c0_10] : memref<12x16xf32, #tpu.memory_space<vmem>>, vector<4x16xf32>
    tpu.vector_store %arg7[%c0_9, %c0_10], %11 {strides = array<i32>} : memref<12x16xf32, #tpu.memory_space<vmem>>, vector<4x16xf32>,
    %c0_11 = arith.constant 0 : index
    %c14 = arith.constant 14 : index
    %13 = vector.load %arg8[%c0_11, %c14] : memref<4x32xf32, #tpu.memory_space<vmem>>, vector<4x16xf32>
    %c4 = arith.constant 4 : index
    %c0_12 = arith.constant 0 : index
    %14 = vector.load %arg7[%c4, %c0_12] : memref<12x16xf32, #tpu.memory_space<vmem>>, vector<4x16xf32>
    tpu.vector_store %arg7[%c4, %c0_12], %13 {strides = array<i32>} : memref<12x16xf32, #tpu.memory_space<vmem>>, vector<4x16xf32>,
    %c0_13 = arith.constant 0 : index
    %c16_14 = arith.constant 16 : index
    %15 = vector.load %arg8[%c0_13, %c16_14] : memref<4x32xf32, #tpu.memory_space<vmem>>, vector<4x16xf32>
    %c8 = arith.constant 8 : index
    %c0_15 = arith.constant 0 : index
    %16 = vector.load %arg7[%c8, %c0_15] : memref<12x16xf32, #tpu.memory_space<vmem>>, vector<4x16xf32>
    tpu.vector_store %arg7[%c8, %c0_15], %15 {strides = array<i32>} : memref<12x16xf32, #tpu.memory_space<vmem>>, vector<4x16xf32>,
    %c0_16 = arith.constant 0 : index
    %c0_17 = arith.constant 0 : index
    %17 = vector.load %arg4[%c0_16, %c0_17] : memref<8x12xf32, #tpu.memory_space<vmem>>, vector<8x12xf32>
    %c0_18 = arith.constant 0 : index
    %c0_19 = arith.constant 0 : index
    %18 = vector.load %arg7[%c0_18, %c0_19] : memref<12x16xf32, #tpu.memory_space<vmem>>, vector<12x16xf32>
    %cst = arith.constant dense<0.000000e+00> : vector<8x16xf32>
    %19 = tpu.matmul %17, %18, %cst {dimension_numbers = #tpu.dot_dimension_numbers<[1], [0], [0], [1], [0, 0, 1, 1], [], []>} : vector<8x12xf32>, vector<12x16xf32>, vector<8x16xf32> -> vector<8x16xf32>
    %c0_20 = arith.constant 0 : index
    %c0_21 = arith.constant 0 : index
    %20 = vector.load %arg5[%c0_20, %c0_21] : memref<8x1xf32, #tpu.memory_space<vmem>>, vector<8x1xf32>
    %21 = vector.broadcast %20 : vector<8x1xf32> to vector<8x16xf32>
    %22 = arith.addf %19, %21 : vector<8x16xf32>
    %c0_22 = arith.constant 0 : index
    %c0_23 = arith.constant 0 : index
    %c0_24 = arith.constant 0 : index
    %23 = vector.load %arg6[%c0_22, %c0_23, %c0_24] : memref<1x8x16xf32, #tpu.memory_space<vmem>>, vector<1x8x16xf32>
    %24 = vector.shape_cast %23 : vector<1x8x16xf32> to vector<8x16xf32>
    %25 = vector.shape_cast %22 : vector<8x16xf32> to vector<1x8x16xf32>
    tpu.vector_store %arg6[%c0_22, %c0_23, %c0_24], %25 {strides = array<i32>} : memref<1x8x16xf32, #tpu.memory_space<vmem>>, vector<1x8x16xf32>,
    return
  }
  func.func @transform_0(%arg0: i32, %arg1: i32) -> (i32, i32, i32) {
    %c1_i32 = arith.constant 1 : i32
    %0 = arith.muli %arg1, %c1_i32 : i32
    %c1_i32_0 = arith.constant 1 : i32
    %1 = arith.subi %0, %c1_i32_0 : i32
    %c0_i32 = arith.constant 0 : i32
    %2 = arith.maxsi %1, %c0_i32 : i32
    %c0_i32_1 = arith.constant 0 : i32
    %c0_i32_2 = arith.constant 0 : i32
    return %arg0, %c0_i32_1, %2 : i32, i32, i32
  }
  func.func @transform_1(%arg0: i32, %arg1: i32) -> (i32, i32, i32) {
    %c0_i32 = arith.constant 0 : i32
    %c0_i32_0 = arith.constant 0 : i32
    return %arg0, %c0_i32, %arg1 : i32, i32, i32
  }
  func.func @transform_2(%arg0: i32, %arg1: i32) -> (i32, i32) {
    %c0_i32 = arith.constant 0 : i32
    %c0_i32_0 = arith.constant 0 : i32
    %c0_i32_1 = arith.constant 0 : i32
    return %c0_i32, %c0_i32_0 : i32, i32
  }
  func.func @transform_3(%arg0: i32, %arg1: i32) -> (i32, i32) {
    %c0_i32 = arith.constant 0 : i32
    %c0_i32_0 = arith.constant 0 : i32
    %c0_i32_1 = arith.constant 0 : i32
    return %c0_i32, %c0_i32_0 : i32, i32
  }
  func.func @transform_4(%arg0: i32, %arg1: i32) -> (i32, i32, i32) {
    %c0_i32 = arith.constant 0 : i32
    %c0_i32_0 = arith.constant 0 : i32
    return %arg0, %c0_i32, %arg1 : i32, i32, i32
  }
}

</mosaic_0001>

<llo_original>
// kernel: tpu_custom_call.1
$region0: #{tpu_custom_call.1}
  #allocation0 [shape = 'u32[]', space=smem, size = 0x4, offset = 0x4, fixed_abs, tag = 'smem constant byte address 0x4 - core index']
  #allocation1 [shape = 'u32[144,128]{1,0:T(1,128)}', space=vmem, size = 0x12000, scoped, tag = 'internal scratch']
  #allocation2 [shape = 'f32[12,16]{1,0:T(8,128)}', space=vmem, size = 0x2000, scoped, tag = 'scratch operand']
  #allocation3 [shape = 'f32[4,32]{1,0:T(4,128)}', space=vmem, size = 0x800, scoped, tag = 'scratch operand']
  %s0 = inlined_call_operand.vmem [shape: f32[2,4,16], index: 0, kind: input, shape index: {}]
  %s1 = inlined_call_operand.hbm [shape: f32[2,4,16], index: 1, kind: input, shape index: {}]
  %s2 = inlined_call_operand.vmem [shape: f32[8,12], index: 2, kind: input, shape index: {}]
  %s3 = inlined_call_operand.vmem [shape: f32[8,1], index: 3, kind: input, shape index: {}]
  %s4 = inlined_call_operand.hbm [shape: f32[2,8,16], index: 4, kind: output, shape index: {}]
  %s5 = sld [smem:[#allocation0]]
  $region53: #{tpu_custom_call.1} parent=0
    _
  %s7 = ssub.s32 1, %s5
  %s8 = scalar_select 0, %s7, %s5
  $region1: #{tpu_custom_call.1} parent=0
    #allocation4 [shape = 'u8[4096]{0}', space=vmem, size = 0x1000, scoped, tag = 'input window, operand 1']
    #allocation5 [shape = 's32[2]{0}', space=sflag, size = 0x8, scoped, tag = 'scoped memory for tpu_custom_call.1']
    #allocation6 [shape = 's32[2]{0}', space=sflag, size = 0x8, scoped, tag = 'scoped memory for tpu_custom_call.1']
    #allocation7 [shape = 'u8[8192]{0}', space=vmem, size = 0x2000, scoped, tag = 'output window, operand 0']
    %9 = vsyncpa [#allocation5], 0
    %s10 = scalar_lea.sflag [#allocation5], 1
    %11 = vsyncpa %s10, 0
    %12 = vsyncpa [#allocation6], 0
    %s13 = scalar_lea.sflag [#allocation6], 1
    %14 = vsyncpa %s13, 0
    loop: start=0, step=1, limit=4
    $region2: #{tpu_custom_call.1} parent=1 // loop_pre_header
      _
    $region3: #{tpu_custom_call.1} parent=1 // loop_header
      %s16 = sphi 0, %s20
      %p17 = scmp.ge.s32.totalorder %s16, 4
      %s23 = sphi 0, %s35
      %s24 = sphi 0, %s31
      %s25 = sphi 0, %s23
      %s26 = sphi 0, %s24
      %s27 = sphi 0, %s25
      %s28 = sphi 0, %s26
      %s46 = sphi 0, %s48
      %s49 = sphi 0, %s46
      %s50 = sphi 0, %s49
      %s66 = sphi 0, %s50
      %s74 = sphi 0, %s76
      %s77 = sphi 0, %s74
      %s78 = sphi 0, %s77
      %s94 = sphi 0, %s78
      %s98 = sphi 0, %s98
      %s100 = sphi 0, %s98
      %s101 = sphi 0, %s100
      %s115 = sphi 0, %s101
      %s119 = sphi 0, %s119
      %s121 = sphi 0, %s119
      %s122 = sphi 0, %s121
      %s136 = sphi 0, %s122
      %s144 = sphi 0, %s146
      %s147 = sphi 0, %s144
      %s148 = sphi 0, %s147
      %s164 = sphi 0, %s148
    $region4: #{tpu_custom_call.1} parent=1 // loop_header_branch
      %19 = sbr.rel (%p17) target = $region8
    $region5: #{tpu_custom_call.1} parent=1 // loop_body
      %s21 = ssub.s32 %s16, 1
      %s22 = ssub.s32 %s16, 2
      %s29 = sadd.s32 1, %s24
      %p30 = scmp.ge.s32.totalorder %s29, 1
      %s31 = scalar_select %p30, 0, %s29
      %s32 = sadd.s32 1, %s23
      %s33 = scalar_select %p30, %s32, %s23
      %p34 = scmp.ge.s32.totalorder %s33, 2
      %s35 = scalar_select %p34, 0, %s33
      %s36 = ssub.s32 %s24, 1
      %p37 = scmp.gt.s32.totalorder %s36, 0
      %s38 = scalar_select %p37, %s36, 0
      %s39 = ssub.s32 %s31, 1
      %p40 = scmp.gt.s32.totalorder %s39, 0
      %s41 = scalar_select %p40, %s39, 0
      %s42 = ssub.s32 %s23, %s35
      %s43 = ssub.s32 %s38, %s41
      %s44 = sor.u32 %s42, %s43
      %p45 = scmp.eq.s32.totalorder %s44, 0
      %s47 = sadd.s32 %s46, 1
      %s48 = scalar_select %p45, %s46, %s47
      %p51 = pneg %p45
      %p52 = scmp.eq.s32.totalorder %s16, 1
      %p53 = por %p51, %p52
      %p54 = scmp.ne.s32.totalorder %s46, %s49
      %p55 = scmp.eq.s32.totalorder %s16, 0
      %p56 = por %p54, %p55
      %p57 = scmp.ne.s32.totalorder %s46, %s49
      %p58 = scmp.eq.s32.totalorder %s21, 1
      %p59 = por %p57, %p58
      %p60 = scmp.ne.s32.totalorder %s49, %s50
      %p61 = scmp.eq.s32.totalorder %s21, 0
      %p62 = por %p60, %p61
      %p63 = scmp.ne.s32.totalorder %s49, %s50
      %p64 = scmp.eq.s32.totalorder %s22, 1
      %p65 = por %p63, %p64
      %p67 = scmp.ne.s32.totalorder %s50, %s66
      %p68 = scmp.eq.s32.totalorder %s22, 0
      %p69 = por %p67, %p68
      %s70 = ssub.s32 %s23, %s35
      %s71 = ssub.s32 %s24, %s31
      %s72 = sor.u32 %s70, %s71
      %p73 = scmp.eq.s32.totalorder %s72, 0
      %s75 = sadd.s32 %s74, 1
      %s76 = scalar_select %p73, %s74, %s75
      %p79 = pneg %p73
      %p80 = scmp.eq.s32.totalorder %s16, 1
      %p81 = por %p79, %p80
      %p82 = scmp.ne.s32.totalorder %s74, %s77
      %p83 = scmp.eq.s32.totalorder %s16, 0
      %p84 = por %p82, %p83
      %p85 = scmp.ne.s32.totalorder %s74, %s77
      %p86 = scmp.eq.s32.totalorder %s21, 1
      %p87 = por %p85, %p86
      %p88 = scmp.ne.s32.totalorder %s77, %s78
      %p89 = scmp.eq.s32.totalorder %s21, 0
      %p90 = por %p88, %p89
      %p91 = scmp.ne.s32.totalorder %s77, %s78
      %p92 = scmp.eq.s32.totalorder %s22, 1
      %p93 = por %p91, %p92
      %p95 = scmp.ne.s32.totalorder %s78, %s94
      %p96 = scmp.eq.s32.totalorder %s22, 0
      %p97 = por %p95, %p96
      %s99 = sadd.s32 %s98, 1
      %p102 = scmp.eq.s32.totalorder %s16, 1
      %p103 = scmp.ne.s32.totalorder %s98, %s100
      %p104 = scmp.eq.s32.totalorder %s16, 0
      %p105 = por %p103, %p104
      %p106 = scmp.ne.s32.totalorder %s98, %s100
      %p107 = scmp.eq.s32.totalorder %s21, 1
      %p108 = por %p106, %p107
      %p109 = scmp.ne.s32.totalorder %s100, %s101
      %p110 = scmp.eq.s32.totalorder %s21, 0
      %p111 = por %p109, %p110
      %p112 = scmp.ne.s32.totalorder %s100, %s101
      %p113 = scmp.eq.s32.totalorder %s22, 1
      %p114 = por %p112, %p113
      %p116 = scmp.ne.s32.totalorder %s101, %s115
      %p117 = scmp.eq.s32.totalorder %s22, 0
      %p118 = por %p116, %p117
      %s120 = sadd.s32 %s119, 1
      %p123 = scmp.eq.s32.totalorder %s16, 1
      %p124 = scmp.ne.s32.totalorder %s119, %s121
      %p125 = scmp.eq.s32.totalorder %s16, 0
      %p126 = por %p124, %p125
      %p127 = scmp.ne.s32.totalorder %s119, %s121
      %p128 = scmp.eq.s32.totalorder %s21, 1
      %p129 = por %p127, %p128
      %p130 = scmp.ne.s32.totalorder %s121, %s122
      %p131 = scmp.eq.s32.totalorder %s21, 0
      %p132 = por %p130, %p131
      %p133 = scmp.ne.s32.totalorder %s121, %s122
      %p134 = scmp.eq.s32.totalorder %s22, 1
      %p135 = por %p133, %p134
      %p137 = scmp.ne.s32.totalorder %s122, %s136
      %p138 = scmp.eq.s32.totalorder %s22, 0
      %p139 = por %p137, %p138
      %s140 = ssub.s32 %s23, %s35
      %s141 = ssub.s32 %s24, %s31
      %s142 = sor.u32 %s140, %s141
      %p143 = scmp.eq.s32.totalorder %s142, 0
      %s145 = sadd.s32 %s144, 1
      %s146 = scalar_select %p143, %s144, %s145
      %p149 = pneg %p143
      %p150 = scmp.eq.s32.totalorder %s16, 1
      %p151 = por %p149, %p150
      %p152 = scmp.ne.s32.totalorder %s144, %s147
      %p153 = scmp.eq.s32.totalorder %s16, 0
      %p154 = por %p152, %p153
      %p155 = scmp.ne.s32.totalorder %s144, %s147
      %p156 = scmp.eq.s32.totalorder %s21, 1
      %p157 = por %p155, %p156
      %p158 = scmp.ne.s32.totalorder %s147, %s148
      %p159 = scmp.eq.s32.totalorder %s21, 0
      %p160 = por %p158, %p159
      %p161 = scmp.ne.s32.totalorder %s147, %s148
      %p162 = scmp.eq.s32.totalorder %s22, 1
      %p163 = por %p161, %p162
      %p165 = scmp.ne.s32.totalorder %s148, %s164
      %p166 = scmp.eq.s32.totalorder %s22, 0
      %p167 = por %p165, %p166
      %p168 = scmp.le.s32.totalorder 1, %s16
      %p169 = scmp.lt.s32.totalorder %s16, 3
      %p170 = pnand %p168, %p169
      %p171 = pneg %p170
      // Predicated region
      $region9: #{tpu_custom_call.1} parent=5 // pred_check
        _
      $region10: #{tpu_custom_call.1} parent=5 // pred_check_branch
        %173 = sbr.rel (%p170) target = $region12
      $region11: #{tpu_custom_call.1} parent=5 // pred_region
        %s174 = ssub.s32 %s16, 1
        // Predicated region
        $region13: #{tpu_custom_call.1} parent=11 // pred_check
          %p175 = pneg %p111
        $region14: #{tpu_custom_call.1} parent=11 // pred_check_branch
          %177 = sbr.rel (%p175) target = $region16
        $region15: #{tpu_custom_call.1} parent=11 // pred_region
          _
        $region16: #{tpu_custom_call.1} parent=11 // pred_fallthru
          _
        // Predicated region
        $region17: #{tpu_custom_call.1} parent=11 // pred_check
          %p178 = pneg %p132
        $region18: #{tpu_custom_call.1} parent=11 // pred_check_branch
          %180 = sbr.rel (%p178) target = $region20
        $region19: #{tpu_custom_call.1} parent=11 // pred_region
          _
        $region20: #{tpu_custom_call.1} parent=11 // pred_fallthru
          _
      $region12: #{tpu_custom_call.1} parent=5 // pred_fallthru
        _
      %p181 = scmp.lt.s32.totalorder %s16, 2
      // Predicated region
      $region21: #{tpu_custom_call.1} parent=5 // pred_check
        %p182 = pneg %p181
      $region22: #{tpu_custom_call.1} parent=5 // pred_check_branch
        %184 = sbr.rel (%p182) target = $region24
      $region23: #{tpu_custom_call.1} parent=5 // pred_region
        // Predicated region
        $region25: #{tpu_custom_call.1} parent=23 // pred_check
          %p185 = pneg %p56
        $region26: #{tpu_custom_call.1} parent=23 // pred_check_branch
          %187 = sbr.rel (%p185) target = $region28
        $region27: #{tpu_custom_call.1} parent=23 // pred_region
          %s188 = ssub.s32 %s24, 1
          %p189 = scmp.gt.s32.totalorder %s188, 0
          %s190 = scalar_select %p189, %s188, 0
          %p191 = scmp.lt.s32.totalorder %s23, 1
          %s192 = scalar_select %p191, %s23, 1
          %p193 = scmp.lt.s32.totalorder %s190, 0
          %s194 = scalar_select %p193, %s190, 0
          %s195 = sadd.s32 %s194, %s192
          %s196 = smul.addr %s195, 4
          %s197 = scalar_lea.vmem %s0, %s196
          %s198 = ssub.s32 %s24, 1
          %p199 = scmp.gt.s32.totalorder %s198, 0
          %s200 = scalar_select %p199, %s198, 0
        $region28: #{tpu_custom_call.1} parent=23 // pred_fallthru
          _
        // Predicated region
        $region29: #{tpu_custom_call.1} parent=23 // pred_check
          %p201 = pneg %p84
        $region30: #{tpu_custom_call.1} parent=23 // pred_check_branch
          %203 = sbr.rel (%p201) target = $region32
        $region31: #{tpu_custom_call.1} parent=23 // pred_region
          %s204 = sand.u32 %s74, 1
          %s205 = scalar_lea.sflag [#allocation5], %s204
          %s206 = sand.u32 %s74, 1
          %s207 = smul.addr %s206, 4
          %s208 = scalar_lea.vmem [#allocation4], %s207
          %s210 = ssub.s32 64, 64
          %211 = vsyncadd %s205, %s210
          %s212 = sadd.s32 %s24, %s23
          %s213 = smul.addr %s212, 64
          %s214 = scalar_lea.hbm %s1, %s213
          %s216 = sshll.u32 %s208, 4
          %s217 = int_to_ptr.vmem [resolvable:$true] %s216
          %219 = dma.hbm_to_vmem [thread:$0]  %s214, 64, %s217, %s205
        $region32: #{tpu_custom_call.1} parent=23 // pred_fallthru
          _
      $region24: #{tpu_custom_call.1} parent=5 // pred_fallthru
        _
      %p220 = scmp.le.s32.totalorder 1, %s16
      %p221 = scmp.lt.s32.totalorder %s16, 3
      %p222 = pnand %p220, %p221
      %p223 = pneg %p222
      // Predicated region
      $region33: #{tpu_custom_call.1} parent=5 // pred_check
        _
      $region34: #{tpu_custom_call.1} parent=5 // pred_check_branch
        %225 = sbr.rel (%p222) target = $region36
      $region35: #{tpu_custom_call.1} parent=5 // pred_region
        %s226 = ssub.s32 %s16, 1
        %s227 = sand.u32 %s77, 1
        %s228 = scalar_lea.sflag [#allocation5], %s227
        %s229 = sand.u32 %s77, 1
        %s230 = smul.addr %s229, 4
        %s231 = scalar_lea.vmem [#allocation4], %s230
        // Predicated region
        $region37: #{tpu_custom_call.1} parent=35 // pred_check
          %p232 = pneg %p90
        $region38: #{tpu_custom_call.1} parent=35 // pred_check_branch
          %234 = sbr.rel (%p232) target = $region40
        $region39: #{tpu_custom_call.1} parent=35 // pred_region
          %235 = dma.done %s228, 64
        $region40: #{tpu_custom_call.1} parent=35 // pred_fallthru
          _
        %s236 = ssub.s32 %s26, 1
        %p237 = scmp.gt.s32.totalorder %s236, 0
        %s238 = scalar_select %p237, %s236, 0
        %p239 = scmp.lt.s32.totalorder %s25, 1
        %s240 = scalar_select %p239, %s25, 1
        %p241 = scmp.lt.s32.totalorder %s238, 0
        %s242 = scalar_select %p241, %s238, 0
        %s243 = sadd.s32 %s242, %s240
        %s244 = smul.addr %s243, 4
        %s245 = scalar_lea.vmem %s0, %s244
        %p246 = pneg %p62
        %p247 = pneg %p59
        %s248 = sand.u32 %s77, 1
        %s249 = scalar_lea.sflag [#allocation5], %s248
        %s250 = sand.u32 %s77, 1
        %s251 = smul.addr %s250, 4
        %s252 = scalar_lea.vmem [#allocation4], %s251
        %p253 = pneg %p90
        %p254 = pneg %p87
        %p255 = pneg %p111
        %p256 = pneg %p108
        %p257 = pneg %p132
        %p258 = pneg %p129
        %p259 = pneg %p160
        %p260 = pneg %p157
        %s261 = sand.u32 %s147, 1
        %s262 = scalar_lea.sflag [#allocation6], %s261
        %s263 = sand.u32 %s147, 1
        %s264 = smul.addr %s263, 8
        %s265 = scalar_lea.vmem [#allocation7], %s264
        %s266 = ssub.s32 %s26, 1
        %p267 = scmp.gt.s32.totalorder %s266, 0
        %s268 = scalar_select %p267, %s266, 0
        %p269 = scmp.lt.s32.totalorder %s25, 1
        %s270 = scalar_select %p269, %s25, 1
        %p271 = scmp.lt.s32.totalorder %s268, 0
        %s272 = scalar_select %p271, %s268, 0
        %s273 = sadd.s32 %s272, %s270
        %s274 = smul.addr %s273, 4
        %s275 = scalar_lea.vmem %s0, %s274
        %s276 = ssub.s32 %s26, 1
        %p277 = scmp.gt.s32.totalorder %s276, 0
        %s278 = scalar_select %p277, %s276, 0
        %v279 = vld [vmem:[%s275] sm:$0xf]
        %p280 = scmp.gt.s32.totalorder %s26, 0
        %s281 = scalar_select %p280, 1, 0
        %s282 = scvt.s32.f32 %s281
        %v283 = vstv %s282
        %v284 = vmul.f32 %v279, %v283
        %vm285 = vcmask 126048
        %286 = vst.msk [vmem:[#allocation3] sm:$0xf] %vm285, %v284
        %v287 = vld [vmem:[%s231] sm:$0xf]
        %289 = vrot.lane.b32.xlu0 %v287, 16
        %v290 = vpop.permute.xlu0 %289
        %vm292 = vcmask 257152
        %293 = vst.msk [vmem:[#allocation3] sm:$0xf] %vm292, %v290
        %v294 = vld [vmem:[#allocation3] sm:$0xf]
        %296 = vrot.lane.b32.xlu0 %v294, 116
        %v297 = vpop.permute.xlu0 %296
        %vm299 = vcmask 125952
        %300 = vst.msk [vmem:[#allocation2] sm:$0xf] %vm299, %v297
        %v301 = vld [vmem:[#allocation3] sm:$0xf]
        %303 = vrot.lane.b32.xlu0 %v301, 114
        %v304 = vpop.permute.xlu0 %303
        %306 = vst.msk [vmem:[#allocation2 + $0x4] sm:$0xf] %vm299, %v304
        %v307 = vld [vmem:[#allocation3] sm:$0xf]
        %309 = vrot.lane.b32.xlu0 %v307, 112
        %v310 = vpop.permute.xlu0 %309
        %312 = vst.msk [vmem:[#allocation2 + $0x8] sm:$0xf] %vm299, %v310
        %v313 = vld [vmem:[%s2] sm:$0xff]
        %v314 = vld [vmem:[#allocation2] sm:$0xff]
        %v315 = vld [vmem:[#allocation2 + $0x8] sm:$0xf]
        %v316 = vld [vmem:[%s3] sm:$0xff]
        %318 = vset.pattern.permute.xlu0 0
        %319 = vperm.xlu0 %318, %v316
        %v320 = vpop.permute.xlu0 %319
        %vm322 = vcmask 97280
        %v324 = vsel %vm322, %v313, 0
        %vm326 = vcmask 1043456
        %v328 = vsel %vm326, %v315, 0
        %330 = vmatprep.subr.mxu0 0.0
        %331 = vmatpush1.msra.mxu0 %v314
        %332 = vmatprep.subr.mxu0 0.0
        %333 = vmatpush1.msra.mxu0 %v328
        %334 = vmatprep.subr.mxu0 0.0
        %335 = vmatpush1.msra.mxu0 0.0
        %336 = vmatprep.subr.mxu0 0.0
        %337 = vmatpush1.msra.mxu0 0.0
        %338 = vmatprep.subr.mxu0 0.0
        %339 = vmatpush1.msra.mxu0 0.0
        %340 = vmatprep.subr.mxu0 0.0
        %341 = vmatpush1.msra.mxu0 0.0
        %342 = vmatprep.subr.mxu0 0.0
        %343 = vmatpush1.msra.mxu0 0.0
        %344 = vmatprep.subr.mxu0 0.0
        %345 = vmatpush1.msra.mxu0 0.0
        %346 = vmatprep.subr.mxu0 0.0
        %347 = vmatpush1.msra.mxu0 0.0
        %348 = vmatprep.subr.mxu0 0.0
        %349 = vmatpush1.msra.mxu0 0.0
        %350 = vmatprep.subr.mxu0 0.0
        %351 = vmatpush1.msra.mxu0 0.0
        %352 = vmatprep.subr.mxu0 0.0
        %353 = vmatpush1.msra.mxu0 0.0
        %354 = vmatprep.subr.mxu0 0.0
        %355 = vmatpush1.msra.mxu0 0.0
        %356 = vmatprep.subr.mxu0 0.0
        %357 = vmatpush1.msra.mxu0 0.0
        %358 = vmatprep.subr.mxu0 0.0
        %359 = vmatpush1.msra.mxu0 0.0
        %360 = vmatprep.subr.mxu0 0.0
        %361 = vmatpush1.msra.mxu0 0.0
        %362 = vmatprep.subr.mxu0 0.0
        %363 = vmatpush1.msra.mxu0 0.0
        %364 = vmatprep.subr.mxu0 0.0
        %365 = vmatpush1.msra.mxu0 0.0
        %366 = vmatprep.subr.mxu0 0.0
        %367 = vmatpush1.msra.mxu0 0.0
        %368 = vmatprep.subr.mxu0 0.0
        %369 = vmatpush1.msra.mxu0 0.0
        %370 = vmatprep.subr.mxu0 0.0
        %371 = vmatpush1.msra.mxu0 0.0
        %372 = vmatprep.subr.mxu0 0.0
        %373 = vmatpush1.msra.mxu0 0.0
        %374 = vmatprep.subr.mxu0 0.0
        %375 = vmatpush1.msra.mxu0 0.0
        %376 = vmatprep.subr.mxu0 0.0
        %377 = vmatpush1.msra.mxu0 0.0
        %378 = vmatprep.subr.mxu0 0.0
        %379 = vmatpush1.msra.mxu0 0.0
        %380 = vmatprep.subr.mxu0 0.0
        %381 = vmatpush1.msra.mxu0 0.0
        %382 = vmatprep.subr.mxu0 0.0
        %383 = vmatpush1.msra.mxu0 0.0
        %384 = vmatprep.subr.mxu0 0.0
        %385 = vmatpush1.msra.mxu0 0.0
        %386 = vmatprep.subr.mxu0 0.0
        %387 = vmatpush1.msra.mxu0 0.0
        %388 = vmatprep.subr.mxu0 0.0
        %389 = vmatpush1.msra.mxu0 0.0
        %390 = vmatprep.subr.mxu0 0.0
        %391 = vmatpush1.msra.mxu0 0.0
        %392 = vmatprep.subr.mxu0 0.0
        %393 = vmatpush1.msra.mxu0 0.0
        %394 = vmatprep.mubr.f32.mxu0 0.0
        %395 = vmatmul.mubr.f32.gmra.mrb[0].mxu0 %v324
        %v396 = vpop.f32.mrb[0].mxu0
        %v397 = vadd.f32 %v320, %v396
        %v398 = vpop.f32.mrb[0].mxu0
        %399 = vdwg.mxu0
        %vm400 = vcmask 130048
        %401 = vst.msk [vmem:[%s265] sm:$0xff] %vm400, %v397
        %s402 = sand.u32 %s147, 1
        %s403 = scalar_lea.sflag [#allocation6], %s402
        %s404 = sand.u32 %s147, 1
        %s405 = smul.addr %s404, 8
        %s406 = scalar_lea.vmem [#allocation7], %s405
        // Predicated region
        $region41: #{tpu_custom_call.1} parent=35 // pred_check
          %p407 = pneg %p157
        $region42: #{tpu_custom_call.1} parent=35 // pred_check_branch
          %409 = sbr.rel (%p407) target = $region44
        $region43: #{tpu_custom_call.1} parent=35 // pred_region
          %s411 = ssub.s32 128, 128
          %412 = vsyncadd %s403, %s411
          %s413 = sadd.s32 %s26, %s25
          %s414 = smul.addr %s413, 128
          %s415 = scalar_lea.hbm %s4, %s414
          %s417 = sshll.u32 %s406, 4
          %s418 = int_to_ptr.vmem [resolvable:$true] %s417
          %420 = dma.vmem_to_hbm [thread:$0]  %s418, 128, %s415, %s403
        $region44: #{tpu_custom_call.1} parent=35 // pred_fallthru
          _
      $region36: #{tpu_custom_call.1} parent=5 // pred_fallthru
        _
      %p421 = scmp.le.s32.totalorder 2, %s16
      // Predicated region
      $region45: #{tpu_custom_call.1} parent=5 // pred_check
        %p422 = pneg %p421
      $region46: #{tpu_custom_call.1} parent=5 // pred_check_branch
        %424 = sbr.rel (%p422) target = $region48
      $region47: #{tpu_custom_call.1} parent=5 // pred_region
        %s425 = ssub.s32 %s16, 2
        // Predicated region
        $region49: #{tpu_custom_call.1} parent=47 // pred_check
          %p426 = pneg %p163
        $region50: #{tpu_custom_call.1} parent=47 // pred_check_branch
          %428 = sbr.rel (%p426) target = $region52
        $region51: #{tpu_custom_call.1} parent=47 // pred_region
          %s429 = sand.u32 %s148, 1
          %s430 = scalar_lea.sflag [#allocation6], %s429
          %s431 = sand.u32 %s148, 1
          %s432 = smul.addr %s431, 8
          %s433 = scalar_lea.vmem [#allocation7], %s432
          %434 = dma.done %s430, 128
        $region52: #{tpu_custom_call.1} parent=47 // pred_fallthru
          _
      $region48: #{tpu_custom_call.1} parent=5 // pred_fallthru
        _
    $region6: #{tpu_custom_call.1} parent=1 // loop_footer
      %s20 = sadd.s32 1, %s16
    $region7: #{tpu_custom_call.1} parent=1 // loop_footer_branch
      %15 = sbr.rel target = $region3
    $region8: #{tpu_custom_call.1} parent=1 // loop_exit
      _
    %435 = vsyncpa [#allocation5], 1
    %s436 = scalar_lea.sflag [#allocation5], 1
    %437 = vsyncpa %s436, 1
    %438 = vsyncpa [#allocation6], 1
    %s439 = scalar_lea.sflag [#allocation6], 1
    %440 = vsyncpa %s439, 1

</llo_original>
